<compile_context>
chip_gen: v7x
topology: tpu7x:2x2x1
jax: 0.10.0
libtpu: 0.0.40
codegen_flags: <defaults>
</compile_context>

<pallas_src>
import jax
import jax.numpy as jnp
from jax.experimental import pallas as pl
from jax.experimental.pallas import tpu as pltpu

_MIN_TILE_B = 512    # minimum batch tile (lane axis); multiple of 128
_MAX_TILE_B = 8192   # ~8 MB f32 temporaries per tile -> safe on v5e/v6e/v7x


def _pick_tile_b(batch):
    """Largest tile <= _MAX_TILE_B that still leaves >= 8 grid steps when possible."""
    t = -(-batch // 8)                         # ceil(B / 8)
    t = -(-t // _MIN_TILE_B) * _MIN_TILE_B     # round up to a multiple of 512
    return max(_MIN_TILE_B, min(_MAX_TILE_B, t))


def dqn_kernel(xT_ref, w1_ref, b1_ref, w2_ref, b2_ref, w3_ref, b3_ref, o_ref):
    # xT_ref: (4, tile_b) bf16 streamed input tile (batch on lanes)
    # w1: (64, 4) bf16   b1: (64, 1) f32
    # w2: (64, 64) bf16  b2: (64, 1) f32
    # w3: (64, 1) f32    b3: (1, 1) f32 in SMEM
    xT = xT_ref[...]
    # Layer 1 (MXU, bf16 x bf16 -> f32 accumulate): (64, 4) @ (4, tile_b)
    h1 = jnp.dot(w1_ref[...], xT, preferred_element_type=jnp.float32)
    h1 = jnp.maximum(h1 + b1_ref[...], 0.0)
    # Layer 2 (MXU, bf16 operands, f32 accumulate): (64, 64) @ (64, tile_b)
    h2 = jnp.dot(w2_ref[...], h1.astype(jnp.bfloat16),
                 preferred_element_type=jnp.float32)
    h2 = jnp.maximum(h2 + b2_ref[...], 0.0)
    # Layer 3 (M=1) off the MXU: VPU multiply + cross-sublane sum (XLU), all f32.
    q = jnp.sum(h2 * w3_ref[...], axis=0, keepdims=True) + b3_ref[0, 0]
    o_ref[...] = q                              # (1, tile_b) lane-dense store


def _dqn_ref_f32(x, params):
    # Pure-f32 reference with exact PyTorch semantics: x @ W.T + b.
    w1, b1, w2, b2, w3, b3 = params
    h = jnp.maximum(x @ w1.T + b1[None, :], 0.0)
    h = jnp.maximum(h @ w2.T + b2[None, :], 0.0)
    return h @ w3.T + b3[None, :]


def _dqn_ref_bf16(x, params):
    # Plain-JAX path matching the kernel's numerics (bf16 matmul operands for
    # layers 1/2, f32 bias/ReLU, full-f32 layer 3).  Also the tiny-batch fallback.
    w1, b1, w2, b2, w3, b3 = params
    xb = x.astype(jnp.bfloat16)
    h = jnp.dot(xb, w1.astype(jnp.bfloat16).T, preferred_element_type=jnp.float32)
    h = jnp.maximum(h + b1[None, :], 0.0)
    h = jnp.dot(h.astype(jnp.bfloat16), w2.astype(jnp.bfloat16).T,
                preferred_element_type=jnp.float32)
    h = jnp.maximum(h + b2[None, :], 0.0)
    return jnp.sum(h * w3.reshape(1, 64), axis=1, keepdims=True) + b3[None, :]


@jax.jit
def dqn_forward(x, params):
    """Forward pass of the DQN.  x: (B, 4) float32 -> (B, 1) float32."""
    w1, b1, w2, b2, w3, b3 = params
    batch = x.shape[0]

    # Tiny batches: pallas_call fixed overhead exceeds the entire compute.
    if batch < _MIN_TILE_B:
        return _dqn_ref_bf16(x, params)

    tile_b = _pick_tile_b(batch)
    n_tiles = pl.cdiv(batch, tile_b)
    padded = n_tiles * tile_b

    # Single fused layout pass under jit: transpose to (4, B) (batch on lanes),
    # cast to bf16 (halves the kernel's HBM input bytes), zero-pad the ragged tail.
    xT = jnp.transpose(x).astype(jnp.bfloat16)
    if padded != batch:
        xT = jnp.pad(xT, ((0, 0), (0, padded - batch)))

    w1b = w1.astype(jnp.bfloat16)
    w2b = w2.astype(jnp.bfloat16)
    b1c = b1.reshape(64, 1).astype(jnp.float32)
    b2c = b2.reshape(64, 1).astype(jnp.float32)
    w3c = w3.reshape(64, 1).astype(jnp.float32)   # (1,64) -> (64,1): row-major safe
    b3c = b3.reshape(1, 1).astype(jnp.float32)

    # Full-array blocks with constant index_map -> VMEM-resident across the grid.
    pinned = lambda arr: pl.BlockSpec(arr.shape, lambda i: (0, 0))

    outT = pl.pallas_call(
        dqn_kernel,
        out_shape=jax.ShapeDtypeStruct((1, padded), jnp.float32),
        grid=(n_tiles,),
        in_specs=[
            pl.BlockSpec((4, tile_b), lambda i: (0, i)),        # streamed input tile
            pinned(w1b), pinned(b1c),
            pinned(w2b), pinned(b2c),
            pinned(w3c),
            pl.BlockSpec(memory_space=pltpu.MemorySpace.SMEM),  # scalar bias b3
        ],
        out_specs=pl.BlockSpec((1, tile_b), lambda i: (0, i)),  # lane-dense output
        compiler_params=pltpu.CompilerParams(
            dimension_semantics=("parallel",),  # v7x: both TensorCores share the grid
        ),
    )(xT, w1b, b1c, w2b, b2c, w3c, b3c)

    # (1, padded) -> (B, 1): reshape + slice only (no transpose copy), fused by jit.
    return outT.reshape(-1)[:batch].reshape(batch, 1)


def _xavier_uniform(key, out_features, in_features):
    # Matches nn.init.xavier_uniform_ (gain=1): U(-limit, limit), limit=sqrt(6/(fan_in+fan_out))
    limit = (6.0 / (in_features + out_features)) ** 0.5
    return jax.random.uniform(key, (out_features, in_features), jnp.float32, -limit, limit)


def init_params(key):
    # PyTorch-layout parameters: weights (out, in), biases (out,) zero-init.
    k1, k2, k3 = jax.random.split(key, 3)
    return (
        _xavier_uniform(k1, 64, 4),  jnp.zeros((64,), jnp.float32),
        _xavier_uniform(k2, 64, 64), jnp.zeros((64,), jnp.float32),
        _xavier_uniform(k3, 1, 64),  jnp.zeros((1,), jnp.float32),
    )


if __name__ == "__main__":
    key = jax.random.PRNGKey(0)
    pkey, xkey = jax.random.split(key)
    params = init_params(pkey)

    # B=1000 -> tile_b=512, 2 grid tiles + ragged tail (exercises padding path).
    B = 1000
    x = jax.random.normal(xkey, (B, 4), jnp.float32)

    out = jax.block_until_ready(dqn_forward(x, params))
    assert out.shape == (B, 1)

    ref_match = _dqn_ref_bf16(x, params)   # same bf16-operand numerics as the kernel
    ref_f32 = _dqn_ref_f32(x, params)      # original PyTorch f32 semantics
    assert jnp.allclose(out, ref_match, atol=2e-3, rtol=2e-3)
    assert jnp.allclose(out, ref_f32, atol=5e-2, rtol=5e-2)

    # Tiny-batch dispatch sanity check (plain-XLA fallback, matching numerics).
    out_small = jax.block_until_ready(dqn_forward(x[:8], params))
    assert out_small.shape == (8, 1)
    assert jnp.allclose(out_small, ref_match[:8], atol=2e-3, rtol=2e-3)

    print("KERNEL_OK")
</pallas_src>

<mosaic_0001>
module attributes {stable_mosaic.version = 11 : i64} {
  func.func @dqn_kernel(%arg0: i32, %arg1: memref<4x512xbf16, #tpu.memory_space<vmem>>, %arg2: memref<64x4xbf16, #tpu.memory_space<vmem>>, %arg3: memref<64x1xf32, #tpu.memory_space<vmem>>, %arg4: memref<64x64xbf16, #tpu.memory_space<vmem>>, %arg5: memref<64x1xf32, #tpu.memory_space<vmem>>, %arg6: memref<64x1xf32, #tpu.memory_space<vmem>>, %arg7: memref<1x1xf32, #tpu.memory_space<smem>>, %arg8: memref<1x512xf32, #tpu.memory_space<vmem>>) attributes {dimension_semantics = [#tpu.dimension_semantics<parallel>], iteration_bounds = array<i64: 2>, scalar_prefetch = 0 : i64, scratch_operands = 0 : i64, tpu.core_type = #tpu.core_type<tc>, window_params = [{transform_indices = @transform_0, window_bounds = array<i64: 4, 512>}, {pipeline_mode = #tpu.pipeline_mode<synchronous>, transform_indices = @transform_1, window_bounds = array<i64: 64, 4>}, {pipeline_mode = #tpu.pipeline_mode<synchronous>, transform_indices = @transform_2, window_bounds = array<i64: 64, 1>}, {pipeline_mode = #tpu.pipeline_mode<synchronous>, transform_indices = @transform_3, window_bounds = array<i64: 64, 64>}, {pipeline_mode = #tpu.pipeline_mode<synchronous>, transform_indices = @transform_4, window_bounds = array<i64: 64, 1>}, {pipeline_mode = #tpu.pipeline_mode<synchronous>, transform_indices = @transform_5, window_bounds = array<i64: 64, 1>}, {transform_indices = @transform_6, window_bounds = array<i64: 1, 1>}, {transform_indices = @transform_7, window_bounds = array<i64: 1, 512>}]} {
    %c0 = arith.constant 0 : index
    %c0_0 = arith.constant 0 : index
    %0 = vector.load %arg1[%c0, %c0_0] : memref<4x512xbf16, #tpu.memory_space<vmem>>, vector<4x512xbf16>
    %c0_1 = arith.constant 0 : index
    %c0_2 = arith.constant 0 : index
    %1 = vector.load %arg2[%c0_1, %c0_2] : memref<64x4xbf16, #tpu.memory_space<vmem>>, vector<64x4xbf16>
    %cst = arith.constant dense<0.000000e+00> : vector<64x512xf32>
    %2 = tpu.matmul %1, %0, %cst {dimension_numbers = #tpu.dot_dimension_numbers<[1], [0], [0], [1], [0, 0, 1, 1], [], []>} : vector<64x4xbf16>, vector<4x512xbf16>, vector<64x512xf32> -> vector<64x512xf32>
    %c0_3 = arith.constant 0 : index
    %c0_4 = arith.constant 0 : index
    %3 = vector.load %arg3[%c0_3, %c0_4] : memref<64x1xf32, #tpu.memory_space<vmem>>, vector<64x1xf32>
    %4 = vector.broadcast %3 : vector<64x1xf32> to vector<64x512xf32>
    %5 = arith.addf %2, %4 : vector<64x512xf32>
    %cst_5 = arith.constant 0.000000e+00 : f32
    %6 = vector.broadcast %cst_5 : f32 to vector<64x512xf32>
    %7 = arith.maximumf %5, %6 : vector<64x512xf32>
    %c0_6 = arith.constant 0 : index
    %c0_7 = arith.constant 0 : index
    %8 = vector.load %arg4[%c0_6, %c0_7] : memref<64x64xbf16, #tpu.memory_space<vmem>>, vector<64x64xbf16>
    %9 = arith.truncf %7 : vector<64x512xf32> to vector<64x512xbf16>
    %cst_8 = arith.constant dense<0.000000e+00> : vector<64x512xf32>
    %10 = tpu.matmul %8, %9, %cst_8 {dimension_numbers = #tpu.dot_dimension_numbers<[1], [0], [0], [1], [0, 0, 1, 1], [], []>} : vector<64x64xbf16>, vector<64x512xbf16>, vector<64x512xf32> -> vector<64x512xf32>
    %c0_9 = arith.constant 0 : index
    %c0_10 = arith.constant 0 : index
    %11 = vector.load %arg5[%c0_9, %c0_10] : memref<64x1xf32, #tpu.memory_space<vmem>>, vector<64x1xf32>
    %12 = vector.broadcast %11 : vector<64x1xf32> to vector<64x512xf32>
    %13 = arith.addf %10, %12 : vector<64x512xf32>
    %cst_11 = arith.constant 0.000000e+00 : f32
    %14 = vector.broadcast %cst_11 : f32 to vector<64x512xf32>
    %15 = arith.maximumf %13, %14 : vector<64x512xf32>
    %c0_12 = arith.constant 0 : index
    %c0_13 = arith.constant 0 : index
    %16 = vector.load %arg6[%c0_12, %c0_13] : memref<64x1xf32, #tpu.memory_space<vmem>>, vector<64x1xf32>
    %17 = vector.broadcast %16 : vector<64x1xf32> to vector<64x512xf32>
    %18 = arith.mulf %15, %17 : vector<64x512xf32>
    %cst_14 = arith.constant dense<0.000000e+00> : vector<512xf32>
    %19 = vector.multi_reduction <add>, %18, %cst_14 [0] : vector<64x512xf32> to vector<512xf32>
    %20 = vector.shape_cast %19 : vector<512xf32> to vector<1x512xf32>
    %c0_15 = arith.constant 0 : index
    %c0_16 = arith.constant 0 : index
    %21 = memref.load %arg7[%c0_15, %c0_16] : memref<1x1xf32, #tpu.memory_space<smem>>
    %22 = vector.broadcast %21 : f32 to vector<1x512xf32>
    %23 = arith.addf %20, %22 : vector<1x512xf32>
    %c0_17 = arith.constant 0 : index
    %c0_18 = arith.constant 0 : index
    %24 = vector.load %arg8[%c0_17, %c0_18] : memref<1x512xf32, #tpu.memory_space<vmem>>, vector<1x512xf32>
    tpu.vector_store %arg8[%c0_17, %c0_18], %23 {strides = array<i32>} : memref<1x512xf32, #tpu.memory_space<vmem>>, vector<1x512xf32>,
    return
  }
  func.func @transform_0(%arg0: i32) -> (i32, i32) {
    %c0_i32 = arith.constant 0 : i32
    %c0_i32_0 = arith.constant 0 : i32
    return %c0_i32, %arg0 : i32, i32
  }
  func.func @transform_1(%arg0: i32) -> (i32, i32) {
    %c0_i32 = arith.constant 0 : i32
    %c0_i32_0 = arith.constant 0 : i32
    %c0_i32_1 = arith.constant 0 : i32
    return %c0_i32, %c0_i32_0 : i32, i32
  }
  func.func @transform_2(%arg0: i32) -> (i32, i32) {
    %c0_i32 = arith.constant 0 : i32
    %c0_i32_0 = arith.constant 0 : i32
    %c0_i32_1 = arith.constant 0 : i32
    return %c0_i32, %c0_i32_0 : i32, i32
  }
  func.func @transform_3(%arg0: i32) -> (i32, i32) {
    %c0_i32 = arith.constant 0 : i32
    %c0_i32_0 = arith.constant 0 : i32
    %c0_i32_1 = arith.constant 0 : i32
    return %c0_i32, %c0_i32_0 : i32, i32
  }
  func.func @transform_4(%arg0: i32) -> (i32, i32) {
    %c0_i32 = arith.constant 0 : i32
    %c0_i32_0 = arith.constant 0 : i32
    %c0_i32_1 = arith.constant 0 : i32
    return %c0_i32, %c0_i32_0 : i32, i32
  }
  func.func @transform_5(%arg0: i32) -> (i32, i32) {
    %c0_i32 = arith.constant 0 : i32
    %c0_i32_0 = arith.constant 0 : i32
    %c0_i32_1 = arith.constant 0 : i32
    return %c0_i32, %c0_i32_0 : i32, i32
  }
  func.func @transform_6(%arg0: i32) -> (i32, i32) {
    %c0_i32 = arith.constant 0 : i32
    %c0_i32_0 = arith.constant 0 : i32
    %c0_i32_1 = arith.constant 0 : i32
    return %c0_i32, %c0_i32_0 : i32, i32
  }
  func.func @transform_7(%arg0: i32) -> (i32, i32) {
    %c0_i32 = arith.constant 0 : i32
    %c0_i32_0 = arith.constant 0 : i32
    return %c0_i32, %arg0 : i32, i32
  }
}

</mosaic_0001>

<llo_original>
// kernel: dqn_forward.1
$region0: #{dqn_forward.1}
  #allocation0 [shape = 'u32[]', space=smem, size = 0x4, offset = 0x4, fixed_abs, tag = 'smem constant byte address 0x4 - core index']
  #allocation1 [shape = 'u32[144,128]{1,0:T(1,128)}', space=vmem, size = 0x12000, scoped, tag = 'internal scratch']
  #allocation2 [shape = 'f32[1,1]{1,0:T(1,128)S(6)}', space=smem, size = 0x200, scoped, tag = 'scoped memory for dqn_forward.1']
  %s0 = inlined_call_operand.vmem [shape: bf16[4,1024], index: 0, kind: input, shape index: {}]
  %s1 = inlined_call_operand.vmem [shape: bf16[64,4], index: 1, kind: input, shape index: {}]
  %s2 = inlined_call_operand.vmem [shape: f32[64,1], index: 2, kind: input, shape index: {}]
  %s3 = inlined_call_operand.vmem [shape: bf16[64,64], index: 3, kind: input, shape index: {}]
  %s4 = inlined_call_operand.vmem [shape: f32[64,1], index: 4, kind: input, shape index: {}]
  %s5 = inlined_call_operand.vmem [shape: f32[64,1], index: 5, kind: input, shape index: {}]
  %s6 = inlined_call_operand.<no memory space> [shape: f32[1,1], index: 6, kind: input, shape index: {}]
  %s7 = inlined_call_operand.vmem [shape: f32[1,1024], index: 7, kind: output, shape index: {}]
  %s8 = sld [smem:[#allocation0]]
  $region61: #{dqn_forward.1} parent=0
    _
  %s10 = ssub.s32 1, %s8
  %s11 = scalar_select 0, %s10, %s8
  %12 = sst [smem:[#allocation2]] %s6
  loop: start=0, step=1, limit=4
  $region2: #{dqn_forward.1} parent=0 // loop_pre_header
    _
  $region3: #{dqn_forward.1} parent=0 // loop_header
    %s14 = sphi 0, %s18
    %p15 = scmp.ge.s32.totalorder %s14, 4
    %s24 = sphi 0, %s26
    %s27 = sphi 0, %s24
    %s28 = sphi 0, %s27
    %s44 = sphi 0, %s28
    %s48 = sphi 0, %s48
    %s50 = sphi 0, %s48
    %s51 = sphi 0, %s50
    %s65 = sphi 0, %s51
    %s69 = sphi 0, %s69
    %s71 = sphi 0, %s69
    %s72 = sphi 0, %s71
    %s86 = sphi 0, %s72
    %s90 = sphi 0, %s90
    %s92 = sphi 0, %s90
    %s93 = sphi 0, %s92
    %s107 = sphi 0, %s93
    %s111 = sphi 0, %s111
    %s113 = sphi 0, %s111
    %s114 = sphi 0, %s113
    %s128 = sphi 0, %s114
    %s132 = sphi 0, %s132
    %s134 = sphi 0, %s132
    %s135 = sphi 0, %s134
    %s149 = sphi 0, %s135
    %s153 = sphi 0, %s153
    %s155 = sphi 0, %s153
    %s156 = sphi 0, %s155
    %s170 = sphi 0, %s156
    %s176 = sphi 0, %s178
    %s179 = sphi 0, %s176
    %s180 = sphi 0, %s179
    %s196 = sphi 0, %s180
  $region4: #{dqn_forward.1} parent=0 // loop_header_branch
    %17 = sbr.rel (%p15) target = $region8
  $region5: #{dqn_forward.1} parent=0 // loop_body
    %s19 = ssub.s32 %s14, 1
    %s20 = ssub.s32 %s14, 2
    %s21 = sadd.s32 %s14, 1
    %s22 = ssub.s32 %s14, %s21
    %p23 = scmp.eq.s32.totalorder %s22, 0
    %s25 = sadd.s32 %s24, 1
    %s26 = scalar_select %p23, %s24, %s25
    %p29 = pneg %p23
    %p30 = scmp.eq.s32.totalorder %s14, 1
    %p31 = por %p29, %p30
    %p32 = scmp.ne.s32.totalorder %s24, %s27
    %p33 = scmp.eq.s32.totalorder %s14, 0
    %p34 = por %p32, %p33
    %p35 = scmp.ne.s32.totalorder %s24, %s27
    %p36 = scmp.eq.s32.totalorder %s19, 1
    %p37 = por %p35, %p36
    %p38 = scmp.ne.s32.totalorder %s27, %s28
    %p39 = scmp.eq.s32.totalorder %s19, 0
    %p40 = por %p38, %p39
    %p41 = scmp.ne.s32.totalorder %s27, %s28
    %p42 = scmp.eq.s32.totalorder %s20, 1
    %p43 = por %p41, %p42
    %p45 = scmp.ne.s32.totalorder %s28, %s44
    %p46 = scmp.eq.s32.totalorder %s20, 0
    %p47 = por %p45, %p46
    %s49 = sadd.s32 %s48, 1
    %p52 = scmp.eq.s32.totalorder %s14, 1
    %p53 = scmp.ne.s32.totalorder %s48, %s50
    %p54 = scmp.eq.s32.totalorder %s14, 0
    %p55 = por %p53, %p54
    %p56 = scmp.ne.s32.totalorder %s48, %s50
    %p57 = scmp.eq.s32.totalorder %s19, 1
    %p58 = por %p56, %p57
    %p59 = scmp.ne.s32.totalorder %s50, %s51
    %p60 = scmp.eq.s32.totalorder %s19, 0
    %p61 = por %p59, %p60
    %p62 = scmp.ne.s32.totalorder %s50, %s51
    %p63 = scmp.eq.s32.totalorder %s20, 1
    %p64 = por %p62, %p63
    %p66 = scmp.ne.s32.totalorder %s51, %s65
    %p67 = scmp.eq.s32.totalorder %s20, 0
    %p68 = por %p66, %p67
    %s70 = sadd.s32 %s69, 1
    %p73 = scmp.eq.s32.totalorder %s14, 1
    %p74 = scmp.ne.s32.totalorder %s69, %s71
    %p75 = scmp.eq.s32.totalorder %s14, 0
    %p76 = por %p74, %p75
    %p77 = scmp.ne.s32.totalorder %s69, %s71
    %p78 = scmp.eq.s32.totalorder %s19, 1
    %p79 = por %p77, %p78
    %p80 = scmp.ne.s32.totalorder %s71, %s72
    %p81 = scmp.eq.s32.totalorder %s19, 0
    %p82 = por %p80, %p81
    %p83 = scmp.ne.s32.totalorder %s71, %s72
    %p84 = scmp.eq.s32.totalorder %s20, 1
    %p85 = por %p83, %p84
    %p87 = scmp.ne.s32.totalorder %s72, %s86
    %p88 = scmp.eq.s32.totalorder %s20, 0
    %p89 = por %p87, %p88
    %s91 = sadd.s32 %s90, 1
    %p94 = scmp.eq.s32.totalorder %s14, 1
    %p95 = scmp.ne.s32.totalorder %s90, %s92
    %p96 = scmp.eq.s32.totalorder %s14, 0
    %p97 = por %p95, %p96
    %p98 = scmp.ne.s32.totalorder %s90, %s92
    %p99 = scmp.eq.s32.totalorder %s19, 1
    %p100 = por %p98, %p99
    %p101 = scmp.ne.s32.totalorder %s92, %s93
    %p102 = scmp.eq.s32.totalorder %s19, 0
    %p103 = por %p101, %p102
    %p104 = scmp.ne.s32.totalorder %s92, %s93
    %p105 = scmp.eq.s32.totalorder %s20, 1
    %p106 = por %p104, %p105
    %p108 = scmp.ne.s32.totalorder %s93, %s107
    %p109 = scmp.eq.s32.totalorder %s20, 0
    %p110 = por %p108, %p109
    %s112 = sadd.s32 %s111, 1
    %p115 = scmp.eq.s32.totalorder %s14, 1
    %p116 = scmp.ne.s32.totalorder %s111, %s113
    %p117 = scmp.eq.s32.totalorder %s14, 0
    %p118 = por %p116, %p117
    %p119 = scmp.ne.s32.totalorder %s111, %s113
    %p120 = scmp.eq.s32.totalorder %s19, 1
    %p121 = por %p119, %p120
    %p122 = scmp.ne.s32.totalorder %s113, %s114
    %p123 = scmp.eq.s32.totalorder %s19, 0
    %p124 = por %p122, %p123
    %p125 = scmp.ne.s32.totalorder %s113, %s114
    %p126 = scmp.eq.s32.totalorder %s20, 1
    %p127 = por %p125, %p126
    %p129 = scmp.ne.s32.totalorder %s114, %s128
    %p130 = scmp.eq.s32.totalorder %s20, 0
    %p131 = por %p129, %p130
    %s133 = sadd.s32 %s132, 1
    %p136 = scmp.eq.s32.totalorder %s14, 1
    %p137 = scmp.ne.s32.totalorder %s132, %s134
    %p138 = scmp.eq.s32.totalorder %s14, 0
    %p139 = por %p137, %p138
    %p140 = scmp.ne.s32.totalorder %s132, %s134
    %p141 = scmp.eq.s32.totalorder %s19, 1
    %p142 = por %p140, %p141
    %p143 = scmp.ne.s32.totalorder %s134, %s135
    %p144 = scmp.eq.s32.totalorder %s19, 0
    %p145 = por %p143, %p144
    %p146 = scmp.ne.s32.totalorder %s134, %s135
    %p147 = scmp.eq.s32.totalorder %s20, 1
    %p148 = por %p146, %p147
    %p150 = scmp.ne.s32.totalorder %s135, %s149
    %p151 = scmp.eq.s32.totalorder %s20, 0
    %p152 = por %p150, %p151
    %s154 = sadd.s32 %s153, 1
    %p157 = scmp.eq.s32.totalorder %s14, 1
    %p158 = scmp.ne.s32.totalorder %s153, %s155
    %p159 = scmp.eq.s32.totalorder %s14, 0
    %p160 = por %p158, %p159
    %p161 = scmp.ne.s32.totalorder %s153, %s155
    %p162 = scmp.eq.s32.totalorder %s19, 1
    %p163 = por %p161, %p162
    %p164 = scmp.ne.s32.totalorder %s155, %s156
    %p165 = scmp.eq.s32.totalorder %s19, 0
    %p166 = por %p164, %p165
    %p167 = scmp.ne.s32.totalorder %s155, %s156
    %p168 = scmp.eq.s32.totalorder %s20, 1
    %p169 = por %p167, %p168
    %p171 = scmp.ne.s32.totalorder %s156, %s170
    %p172 = scmp.eq.s32.totalorder %s20, 0
    %p173 = por %p171, %p172
    %s174 = ssub.s32 %s14, %s21
    %p175 = scmp.eq.s32.totalorder %s174, 0
    %s177 = sadd.s32 %s176, 1
    %s178 = scalar_select %p175, %s176, %s177
    %p181 = pneg %p175
    %p182 = scmp.eq.s32.totalorder %s14, 1
    %p183 = por %p181, %p182
    %p184 = scmp.ne.s32.totalorder %s176, %s179
    %p185 = scmp.eq.s32.totalorder %s14, 0
    %p186 = por %p184, %p185
    %p187 = scmp.ne.s32.totalorder %s176, %s179
    %p188 = scmp.eq.s32.totalorder %s19, 1
    %p189 = por %p187, %p188
    %p190 = scmp.ne.s32.totalorder %s179, %s180
    %p191 = scmp.eq.s32.totalorder %s19, 0
    %p192 = por %p190, %p191
    %p193 = scmp.ne.s32.totalorder %s179, %s180
    %p194 = scmp.eq.s32.totalorder %s20, 1
    %p195 = por %p193, %p194
    %p197 = scmp.ne.s32.totalorder %s180, %s196
    %p198 = scmp.eq.s32.totalorder %s20, 0
    %p199 = por %p197, %p198
    %p200 = scmp.le.s32.totalorder 1, %s14
    %p201 = scmp.lt.s32.totalorder %s14, 3
    %p202 = pnand %p200, %p201
    %p203 = pneg %p202
    // Predicated region
    $region9: #{dqn_forward.1} parent=5 // pred_check
      _
    $region10: #{dqn_forward.1} parent=5 // pred_check_branch
      %205 = sbr.rel (%p202) target = $region12
    $region11: #{dqn_forward.1} parent=5 // pred_region
      %s206 = ssub.s32 %s14, 1
      // Predicated region
      $region13: #{dqn_forward.1} parent=11 // pred_check
        %p207 = pneg %p61
      $region14: #{dqn_forward.1} parent=11 // pred_check_branch
        %209 = sbr.rel (%p207) target = $region16
      $region15: #{dqn_forward.1} parent=11 // pred_region
        _
      $region16: #{dqn_forward.1} parent=11 // pred_fallthru
        _
      // Predicated region
      $region17: #{dqn_forward.1} parent=11 // pred_check
        %p210 = pneg %p82
      $region18: #{dqn_forward.1} parent=11 // pred_check_branch
        %212 = sbr.rel (%p210) target = $region20
      $region19: #{dqn_forward.1} parent=11 // pred_region
        _
      $region20: #{dqn_forward.1} parent=11 // pred_fallthru
        _
      // Predicated region
      $region21: #{dqn_forward.1} parent=11 // pred_check
        %p213 = pneg %p103
      $region22: #{dqn_forward.1} parent=11 // pred_check_branch
        %215 = sbr.rel (%p213) target = $region24
      $region23: #{dqn_forward.1} parent=11 // pred_region
        _
      $region24: #{dqn_forward.1} parent=11 // pred_fallthru
        _
      // Predicated region
      $region25: #{dqn_forward.1} parent=11 // pred_check
        %p216 = pneg %p124
      $region26: #{dqn_forward.1} parent=11 // pred_check_branch
        %218 = sbr.rel (%p216) target = $region28
      $region27: #{dqn_forward.1} parent=11 // pred_region
        _
      $region28: #{dqn_forward.1} parent=11 // pred_fallthru
        _
      // Predicated region
      $region29: #{dqn_forward.1} parent=11 // pred_check
        %p219 = pneg %p145
      $region30: #{dqn_forward.1} parent=11 // pred_check_branch
        %221 = sbr.rel (%p219) target = $region32
      $region31: #{dqn_forward.1} parent=11 // pred_region
        _
      $region32: #{dqn_forward.1} parent=11 // pred_fallthru
        _
      // Predicated region
      $region33: #{dqn_forward.1} parent=11 // pred_check
        %p222 = pneg %p166
      $region34: #{dqn_forward.1} parent=11 // pred_check_branch
        %224 = sbr.rel (%p222) target = $region36
      $region35: #{dqn_forward.1} parent=11 // pred_region
        _
      $region36: #{dqn_forward.1} parent=11 // pred_fallthru
        _
    $region12: #{dqn_forward.1} parent=5 // pred_fallthru
      _
    %p225 = scmp.lt.s32.totalorder %s14, 2
    // Predicated region
    $region37: #{dqn_forward.1} parent=5 // pred_check
      %p226 = pneg %p225
    $region38: #{dqn_forward.1} parent=5 // pred_check_branch
      %228 = sbr.rel (%p226) target = $region40
    $region39: #{dqn_forward.1} parent=5 // pred_region
      // Predicated region
      $region41: #{dqn_forward.1} parent=39 // pred_check
        %p229 = pneg %p34
      $region42: #{dqn_forward.1} parent=39 // pred_check_branch
        %231 = sbr.rel (%p229) target = $region44
      $region43: #{dqn_forward.1} parent=39 // pred_region
        %s232 = smul.u32 4, %s14
        %p233 = scmp.lt.s32.totalorder %s232, 7
        %s234 = scalar_select %p233, %s232, 7
        %s235 = smul.addr %s234, 2
        %s236 = scalar_lea.vmem %s0, %s235
        %s237 = smul.u32 4, %s14
      $region44: #{dqn_forward.1} parent=39 // pred_fallthru
        _
    $region40: #{dqn_forward.1} parent=5 // pred_fallthru
      _
    %p238 = scmp.le.s32.totalorder 1, %s14
    %p239 = scmp.lt.s32.totalorder %s14, 3
    %p240 = pnand %p238, %p239
    %p241 = pneg %p240
    // Predicated region
    $region45: #{dqn_forward.1} parent=5 // pred_check
      _
    $region46: #{dqn_forward.1} parent=5 // pred_check_branch
      %243 = sbr.rel (%p240) target = $region48
    $region47: #{dqn_forward.1} parent=5 // pred_region
      %s244 = ssub.s32 %s14, 1
      %s245 = smul.u32 4, %s19
      %p246 = scmp.lt.s32.totalorder %s245, 7
      %s247 = scalar_select %p246, %s245, 7
      %s248 = smul.addr %s247, 2
      %s249 = scalar_lea.vmem %s0, %s248
      %p250 = pneg %p40
      %p251 = pneg %p37
      %p252 = pneg %p61
      %p253 = pneg %p58
      %p254 = pneg %p82
      %p255 = pneg %p79
      %p256 = pneg %p103
      %p257 = pneg %p100
      %p258 = pneg %p124
      %p259 = pneg %p121
      %p260 = pneg %p145
      %p261 = pneg %p142
      %p262 = pneg %p166
      %p263 = pneg %p163
      %p264 = pneg %p192
      %p265 = pneg %p189
      %s266 = smul.u32 4, %s19
      %p267 = scmp.lt.s32.totalorder %s266, 7
      %s268 = scalar_select %p267, %s266, 7
      %s269 = scalar_lea.vmem %s7, %s268
      %s270 = smul.u32 4, %s19
      %p271 = scmp.lt.s32.totalorder %s270, 7
      %s272 = scalar_select %p271, %s270, 7
      %s273 = smul.addr %s272, 2
      %s274 = scalar_lea.vmem %s0, %s273
      %s275 = smul.u32 4, %s19
      %s276 = smul.u32 4, %s19
      %p277 = scmp.lt.s32.totalorder %s276, 7
      %s278 = scalar_select %p277, %s276, 7
      %s279 = scalar_lea.vmem %s7, %s278
      %s280 = smul.u32 4, %s19
      %v282 = vld [vmem:[%s274] sm:$0xff]
      %v283 = vld [vmem:[%s1] sm:$0xf]
      %v284 = vld [vmem:[%s1 + $0x4] sm:$0xf]
      %v285 = vld [vmem:[%s1 + $0x8] sm:$0xf]
      %v286 = vld [vmem:[%s1 + $0xc] sm:$0xf]
      %v287 = vld [vmem:[%s1 + $0x10] sm:$0xf]
      %v288 = vld [vmem:[%s1 + $0x14] sm:$0xf]
      %v289 = vld [vmem:[%s1 + $0x18] sm:$0xf]
      %v290 = vld [vmem:[%s1 + $0x1c] sm:$0xf]
      %v291 = vld [vmem:[%s2] sm:$0xff]
      %v292 = vld [vmem:[%s2 + $0x8] sm:$0xff]
      %v293 = vld [vmem:[%s2 + $0x10] sm:$0xff]
      %v294 = vld [vmem:[%s2 + $0x18] sm:$0xff]
      %v295 = vld [vmem:[%s2 + $0x20] sm:$0xff]
      %v296 = vld [vmem:[%s2 + $0x28] sm:$0xff]
      %v297 = vld [vmem:[%s2 + $0x30] sm:$0xff]
      %v298 = vld [vmem:[%s2 + $0x38] sm:$0xff]
      %300 = vset.pattern.permute.xlu0 0
      %301 = vperm.xlu0 %300, %v291
      %v302 = vpop.permute.xlu0 %301
      %305 = vset.pattern.permute.xlu0 0
      %306 = vperm.xlu0 %305, %v292
      %v307 = vpop.permute.xlu0 %306
      %310 = vset.pattern.permute.xlu0 0
      %311 = vperm.xlu0 %310, %v293
      %v312 = vpop.permute.xlu0 %311
      %315 = vset.pattern.permute.xlu0 0
      %316 = vperm.xlu0 %315, %v294
      %v317 = vpop.permute.xlu0 %316
      %320 = vset.pattern.permute.xlu0 0
      %321 = vperm.xlu0 %320, %v295
      %v322 = vpop.permute.xlu0 %321
      %325 = vset.pattern.permute.xlu0 0
      %326 = vperm.xlu0 %325, %v296
      %v327 = vpop.permute.xlu0 %326
      %330 = vset.pattern.permute.xlu0 0
      %331 = vperm.xlu0 %330, %v297
      %v332 = vpop.permute.xlu0 %331
      %335 = vset.pattern.permute.xlu0 0
      %336 = vperm.xlu0 %335, %v298
      %v337 = vpop.permute.xlu0 %336
      %v347 = vunpack.c.l.b16 %v283
      %v348 = vunpack.c.l.b16 %v284
      %v349 = vunpack.c.l.b16 %v285
      %v350 = vunpack.c.l.b16 %v286
      %v351 = vunpack.c.l.b16 %v287
      %v352 = vunpack.c.l.b16 %v288
      %v353 = vunpack.c.l.b16 %v289
      %v354 = vunpack.c.l.b16 %v290
      %v355 = vpack.c.b16 %v348, %v347
      %v356 = vpack.c.b16 %v350, %v349
      %v357 = vpack.c.b16 %v352, %v351
      %v358 = vpack.c.b16 %v354, %v353
      %v360 = vcombine.high %v282, %v282
      %v362 = vunpack.c.l.s4 1983009808
      %v363 = vunpack.c.0.s8 %v362
      %v364 = vlaneseq
      %v365 = vshrl.u32 %v364, 7
      %v366 = vsub.s32 %v363, %v365
      %v367 = vrot.slane %v282, %v366
      %v369 = vunpack.c.l.s4 1983009808
      %v370 = vunpack.c.0.s8 %v369
      %v371 = vlaneseq
      %v372 = vshrl.u32 %v371, 7
      %v373 = vsub.s32 %v370, %v372
      %v374 = vrot.slane %v360, %v373
      %v375 = vcombine.high %v367, %v367
      %v376 = vcombine.high %v374, %v374
      %vm377 = vcmask 31744
      %v379 = vsel %vm377, %v355, 0
      %v382 = vsel %vm377, %v356, 0
      %v385 = vsel %vm377, %v357, 0
      %v388 = vsel %vm377, %v358, 0
      %vm390 = vcmask 1041408
      %v392 = vsel %vm390, %v367, 0
      %v395 = vsel %vm390, %v375, 0
      %v398 = vsel %vm390, %v374, 0
      %v401 = vsel %vm390, %v376, 0
      %403 = vmatprep.subr.bf16.mxu0 %v395
      %404 = vmatpush1.bf16.msra.mxu0 %v392
      %405 = vmatprep.subr.bf16.mxu0 0
      %406 = vmatpush1.bf16.msra.mxu0 0
      %407 = vmatprep.subr.bf16.mxu0 0
      %408 = vmatpush1.bf16.msra.mxu0 0
      %409 = vmatprep.subr.bf16.mxu0 0
      %410 = vmatpush1.bf16.msra.mxu0 0
      %411 = vmatprep.subr.bf16.mxu0 0
      %412 = vmatpush1.bf16.msra.mxu0 0
      %413 = vmatprep.subr.bf16.mxu0 0
      %414 = vmatpush1.bf16.msra.mxu0 0
      %415 = vmatprep.subr.bf16.mxu0 0
      %416 = vmatpush1.bf16.msra.mxu0 0
      %417 = vmatprep.subr.bf16.mxu0 0
      %418 = vmatpush1.bf16.msra.mxu0 0
      %419 = vmatprep.subr.bf16.mxu0 0
      %420 = vmatpush1.bf16.msra.mxu0 0
      %421 = vmatprep.subr.bf16.mxu0 0
      %422 = vmatpush1.bf16.msra.mxu0 0
      %423 = vmatprep.subr.bf16.mxu0 0
      %424 = vmatpush1.bf16.msra.mxu0 0
      %425 = vmatprep.subr.bf16.mxu0 0
      %426 = vmatpush1.bf16.msra.mxu0 0
      %427 = vmatprep.subr.bf16.mxu0 0
      %428 = vmatpush1.bf16.msra.mxu0 0
      %429 = vmatprep.subr.bf16.mxu0 0
      %430 = vmatpush1.bf16.msra.mxu0 0
      %431 = vmatprep.subr.bf16.mxu0 0
      %432 = vmatpush1.bf16.msra.mxu0 0
      %433 = vmatprep.subr.bf16.mxu0 0
      %434 = vmatpush1.bf16.msra.mxu0 0
      %435 = vmatprep.mubr.bf16.mxu0 0
      %436 = vmatmul.mubr.bf16.gmra.mrb[0].mxu0 %v379
      %v437 = vpop.f32.mrb[0].mxu0
      %v438 = vadd.f32 %v302, %v437
      %v439 = vpop.f32.mrb[0].mxu0
      %v440 = vadd.f32 %v302, %v439
      %v441 = vpop.f32.mrb[0].mxu0
      %v442 = vadd.f32 %v307, %v441
      %v443 = vpop.f32.mrb[0].mxu0
      %v444 = vadd.f32 %v307, %v443
      %445 = vmatprep.mubr.bf16.mxu0 0
      %446 = vmatmul.mubr.bf16.gmra.mrb[0].mxu0 %v382
      %v447 = vpop.f32.mrb[0].mxu0
      %v448 = vadd.f32 %v312, %v447
      %v449 = vpop.f32.mrb[0].mxu0
      %v450 = vadd.f32 %v312, %v449
      %v451 = vpop.f32.mrb[0].mxu0
      %v452 = vadd.f32 %v317, %v451
      %v453 = vpop.f32.mrb[0].mxu0
      %v454 = vadd.f32 %v317, %v453
      %455 = vmatprep.mubr.bf16.mxu0 0
      %456 = vmatmul.mubr.bf16.gmra.mrb[0].mxu0 %v385
      %v457 = vpop.f32.mrb[0].mxu0
      %v458 = vadd.f32 %v322, %v457
      %v459 = vpop.f32.mrb[0].mxu0
      %v460 = vadd.f32 %v322, %v459
      %v461 = vpop.f32.mrb[0].mxu0
      %v462 = vadd.f32 %v327, %v461
      %v463 = vpop.f32.mrb[0].mxu0
      %v464 = vadd.f32 %v327, %v463
      %465 = vmatprep.mubr.bf16.mxu0 0
      %466 = vmatmul.mubr.bf16.gmra.mrb[0].mxu0 %v388
      %v467 = vpop.f32.mrb[0].mxu0
      %v468 = vadd.f32 %v332, %v467
      %v469 = vpop.f32.mrb[0].mxu0
      %v470 = vadd.f32 %v332, %v469
      %v471 = vpop.f32.mrb[0].mxu0
      %v472 = vadd.f32 %v337, %v471
      %v473 = vpop.f32.mrb[0].mxu0
      %v474 = vadd.f32 %v337, %v473
      %475 = vdwg.mxu0
      %476 = vmatprep.subr.bf16.mxu0 %v401
      %477 = vmatpush1.bf16.msra.mxu0 %v398
      %478 = vmatprep.subr.bf16.mxu0 0
      %479 = vmatpush1.bf16.msra.mxu0 0
      %480 = vmatprep.subr.bf16.mxu0 0
      %481 = vmatpush1.bf16.msra.mxu0 0
      %482 = vmatprep.subr.bf16.mxu0 0
      %483 = vmatpush1.bf16.msra.mxu0 0
      %484 = vmatprep.subr.bf16.mxu0 0
      %485 = vmatpush1.bf16.msra.mxu0 0
      %486 = vmatprep.subr.bf16.mxu0 0
      %487 = vmatpush1.bf16.msra.mxu0 0
      %488 = vmatprep.subr.bf16.mxu0 0
      %489 = vmatpush1.bf16.msra.mxu0 0
      %490 = vmatprep.subr.bf16.mxu0 0
      %491 = vmatpush1.bf16.msra.mxu0 0
      %492 = vmatprep.subr.bf16.mxu0 0
      %493 = vmatpush1.bf16.msra.mxu0 0
      %494 = vmatprep.subr.bf16.mxu0 0
      %495 = vmatpush1.bf16.msra.mxu0 0
      %496 = vmatprep.subr.bf16.mxu0 0
      %497 = vmatpush1.bf16.msra.mxu0 0
      %498 = vmatprep.subr.bf16.mxu0 0
      %499 = vmatpush1.bf16.msra.mxu0 0
      %500 = vmatprep.subr.bf16.mxu0 0
      %501 = vmatpush1.bf16.msra.mxu0 0
      %502 = vmatprep.subr.bf16.mxu0 0
      %503 = vmatpush1.bf16.msra.mxu0 0
      %504 = vmatprep.subr.bf16.mxu0 0
      %505 = vmatpush1.bf16.msra.mxu0 0
      %506 = vmatprep.subr.bf16.mxu0 0
      %507 = vmatpush1.bf16.msra.mxu0 0
      %508 = vmatprep.mubr.bf16.mxu0 0
      %509 = vmatmul.mubr.bf16.gmra.mrb[0].mxu0 %v379
      %v510 = vpop.f32.mrb[0].mxu0
      %v511 = vadd.f32 %v302, %v510
      %v512 = vpop.f32.mrb[0].mxu0
      %v513 = vadd.f32 %v302, %v512
      %v514 = vpop.f32.mrb[0].mxu0
      %v515 = vadd.f32 %v307, %v514
      %v516 = vpop.f32.mrb[0].mxu0
      %v517 = vadd.f32 %v307, %v516
      %518 = vmatprep.mubr.bf16.mxu0 0
      %519 = vmatmul.mubr.bf16.gmra.mrb[0].mxu0 %v382
      %v520 = vpop.f32.mrb[0].mxu0
      %v521 = vadd.f32 %v312, %v520
      %v522 = vpop.f32.mrb[0].mxu0
      %v523 = vadd.f32 %v312, %v522
      %v524 = vpop.f32.mrb[0].mxu0
      %v525 = vadd.f32 %v317, %v524
      %v526 = vpop.f32.mrb[0].mxu0
      %v527 = vadd.f32 %v317, %v526
      %528 = vmatprep.mubr.bf16.mxu0 0
      %529 = vmatmul.mubr.bf16.gmra.mrb[0].mxu0 %v385
      %v530 = vpop.f32.mrb[0].mxu0
      %v531 = vadd.f32 %v322, %v530
      %v532 = vpop.f32.mrb[0].mxu0
      %v533 = vadd.f32 %v322, %v532
      %v534 = vpop.f32.mrb[0].mxu0
      %v535 = vadd.f32 %v327, %v534
      %v536 = vpop.f32.mrb[0].mxu0
      %v537 = vadd.f32 %v327, %v536
      %538 = vmatprep.mubr.bf16.mxu0 0
      %539 = vmatmul.mubr.bf16.gmra.mrb[0].mxu0 %v388
      %v540 = vpop.f32.mrb[0].mxu0
      %v541 = vadd.f32 %v332, %v540
      %v542 = vpop.f32.mrb[0].mxu0
      %v543 = vadd.f32 %v332, %v542
      %v544 = vpop.f32.mrb[0].mxu0
      %v545 = vadd.f32 %v337, %v544
      %v546 = vpop.f32.mrb[0].mxu0
      %v547 = vadd.f32 %v337, %v546
      %548 = vdwg.mxu0
      %v549 = vmax.f32 %v438, 0.0
      %v550 = vmax.f32 %v440, 0.0
      %v551 = vmax.f32 %v511, 0.0
      %v552 = vmax.f32 %v513, 0.0
      %v553 = vmax.f32 %v442, 0.0
      %v554 = vmax.f32 %v444, 0.0
      %v555 = vmax.f32 %v515, 0.0
      %v556 = vmax.f32 %v517, 0.0
      %v557 = vmax.f32 %v448, 0.0
      %v558 = vmax.f32 %v450, 0.0
      %v559 = vmax.f32 %v521, 0.0
      %v560 = vmax.f32 %v523, 0.0
      %v561 = vmax.f32 %v452, 0.0
      %v562 = vmax.f32 %v454, 0.0
      %v563 = vmax.f32 %v525, 0.0
      %v564 = vmax.f32 %v527, 0.0
      %v565 = vmax.f32 %v458, 0.0
      %v566 = vmax.f32 %v460, 0.0
      %v567 = vmax.f32 %v531, 0.0
      %v568 = vmax.f32 %v533, 0.0
      %v569 = vmax.f32 %v462, 0.0
      %v570 = vmax.f32 %v464, 0.0
      %v571 = vmax.f32 %v535, 0.0
      %v572 = vmax.f32 %v537, 0.0
      %v573 = vmax.f32 %v468, 0.0
      %v574 = vmax.f32 %v470, 0.0
      %v575 = vmax.f32 %v541, 0.0
      %v576 = vmax.f32 %v543, 0.0
      %v577 = vmax.f32 %v472, 0.0
      %v578 = vmax.f32 %v474, 0.0
      %v579 = vmax.f32 %v545, 0.0
      %v580 = vmax.f32 %v547, 0.0
      %v581 = vld [vmem:[%s3] sm:$0xf]
      %v582 = vld [vmem:[%s3 + $0x4] sm:$0xf]
      %v583 = vld [vmem:[%s3 + $0x8] sm:$0xf]
      %v584 = vld [vmem:[%s3 + $0xc] sm:$0xf]
      %v585 = vld [vmem:[%s3 + $0x10] sm:$0xf]
      %v586 = vld [vmem:[%s3 + $0x14] sm:$0xf]
      %v587 = vld [vmem:[%s3 + $0x18] sm:$0xf]
      %v588 = vld [vmem:[%s3 + $0x1c] sm:$0xf]
      %v589 = vpack.c.bf16 %v553, %v549
      %v590 = vpack.c.bf16 %v554, %v550
      %v591 = vpack.c.bf16 %v555, %v551
      %v592 = vpack.c.bf16 %v556, %v552
      %v593 = vpack.c.bf16 %v561, %v557
      %v594 = vpack.c.bf16 %v562, %v558
      %v595 = vpack.c.bf16 %v563, %v559
      %v596 = vpack.c.bf16 %v564, %v560
      %v597 = vpack.c.bf16 %v569, %v565
      %v598 = vpack.c.bf16 %v570, %v566
      %v599 = vpack.c.bf16 %v571, %v567
      %v600 = vpack.c.bf16 %v572, %v568
      %v601 = vpack.c.bf16 %v577, %v573
      %v602 = vpack.c.bf16 %v578, %v574
      %v603 = vpack.c.bf16 %v579, %v575
      %v604 = vpack.c.bf16 %v580, %v576
      %v605 = vld [vmem:[%s4] sm:$0xff]
      %v606 = vld [vmem:[%s4 + $0x8] sm:$0xff]
      %v607 = vld [vmem:[%s4 + $0x10] sm:$0xff]
      %v608 = vld [vmem:[%s4 + $0x18] sm:$0xff]
      %v609 = vld [vmem:[%s4 + $0x20] sm:$0xff]
      %v610 = vld [vmem:[%s4 + $0x28] sm:$0xff]
      %v611 = vld [vmem:[%s4 + $0x30] sm:$0xff]
      %v612 = vld [vmem:[%s4 + $0x38] sm:$0xff]
      %614 = vset.pattern.permute.xlu0 0
      %615 = vperm.xlu0 %614, %v605
      %v616 = vpop.permute.xlu0 %615
      %619 = vset.pattern.permute.xlu0 0
      %620 = vperm.xlu0 %619, %v606
      %v621 = vpop.permute.xlu0 %620
      %624 = vset.pattern.permute.xlu0 0
      %625 = vperm.xlu0 %624, %v607
      %v626 = vpop.permute.xlu0 %625
      %629 = vset.pattern.permute.xlu0 0
      %630 = vperm.xlu0 %629, %v608
      %v631 = vpop.permute.xlu0 %630
      %634 = vset.pattern.permute.xlu0 0
      %635 = vperm.xlu0 %634, %v609
      %v636 = vpop.permute.xlu0 %635
      %639 = vset.pattern.permute.xlu0 0
      %640 = vperm.xlu0 %639, %v610
      %v641 = vpop.permute.xlu0 %640
      %644 = vset.pattern.permute.xlu0 0
      %645 = vperm.xlu0 %644, %v611
      %v646 = vpop.permute.xlu0 %645
      %649 = vset.pattern.permute.xlu0 0
      %650 = vperm.xlu0 %649, %v612
      %v651 = vpop.permute.xlu0 %650
      %v661 = vunpack.c.l.b16 %v581
      %v662 = vunpack.c.l.b16 %v582
      %v663 = vunpack.c.l.b16 %v583
      %v664 = vunpack.c.l.b16 %v584
      %v665 = vunpack.c.l.b16 %v585
      %v666 = vunpack.c.l.b16 %v586
      %v667 = vunpack.c.l.b16 %v587
      %v668 = vunpack.c.l.b16 %v588
      %v669 = vpack.c.b16 %v662, %v661
      %v670 = vpack.c.b16 %v664, %v663
      %v671 = vpack.c.b16 %v666, %v665
      %v672 = vpack.c.b16 %v668, %v667
      %vm673 = vcmask 523264
      %v675 = vsel %vm673, %v669, 0
      %v678 = vsel %vm673, %v670, 0
      %v681 = vsel %vm673, %v671, 0
      %v684 = vsel %vm673, %v672, 0
      %686 = vmatprep.subr.bf16.mxu0 %v590
      %687 = vmatpush1.bf16.msra.mxu0 %v589
      %688 = vmatprep.subr.bf16.mxu0 %v594
      %689 = vmatpush1.bf16.msra.mxu0 %v593
      %690 = vmatprep.subr.bf16.mxu0 %v598
      %691 = vmatpush1.bf16.msra.mxu0 %v597
      %692 = vmatprep.subr.bf16.mxu0 %v602
      %693 = vmatpush1.bf16.msra.mxu0 %v601
      %694 = vmatprep.subr.bf16.mxu0 0
      %695 = vmatpush1.bf16.msra.mxu0 0
      %696 = vmatprep.subr.bf16.mxu0 0
      %697 = vmatpush1.bf16.msra.mxu0 0
      %698 = vmatprep.subr.bf16.mxu0 0
      %699 = vmatpush1.bf16.msra.mxu0 0
      %700 = vmatprep.subr.bf16.mxu0 0
      %701 = vmatpush1.bf16.msra.mxu0 0
      %702 = vmatprep.subr.bf16.mxu0 0
      %703 = vmatpush1.bf16.msra.mxu0 0
      %704 = vmatprep.subr.bf16.mxu0 0
      %705 = vmatpush1.bf16.msra.mxu0 0
      %706 = vmatprep.subr.bf16.mxu0 0
      %707 = vmatpush1.bf16.msra.mxu0 0
      %708 = vmatprep.subr.bf16.mxu0 0
      %709 = vmatpush1.bf16.msra.mxu0 0
      %710 = vmatprep.subr.bf16.mxu0 0
      %711 = vmatpush1.bf16.msra.mxu0 0
      %712 = vmatprep.subr.bf16.mxu0 0
      %713 = vmatpush1.bf16.msra.mxu0 0
      %714 = vmatprep.subr.bf16.mxu0 0
      %715 = vmatpush1.bf16.msra.mxu0 0
      %716 = vmatprep.subr.bf16.mxu0 0
      %717 = vmatpush1.bf16.msra.mxu0 0
      %718 = vmatprep.mubr.bf16.mxu0 0
      %719 = vmatmul.mubr.bf16.gmra.mrb[0].mxu0 %v675
      %v720 = vpop.f32.mrb[0].mxu0
      %v721 = vadd.f32 %v616, %v720
      %v722 = vpop.f32.mrb[0].mxu0
      %v723 = vadd.f32 %v616, %v722
      %v724 = vpop.f32.mrb[0].mxu0
      %v725 = vadd.f32 %v621, %v724
      %v726 = vpop.f32.mrb[0].mxu0
      %v727 = vadd.f32 %v621, %v726
      %728 = vmatprep.mubr.bf16.mxu0 0
      %729 = vmatmul.mubr.bf16.gmra.mrb[0].mxu0 %v678
      %v730 = vpop.f32.mrb[0].mxu0
      %v731 = vadd.f32 %v626, %v730
      %v732 = vpop.f32.mrb[0].mxu0
      %v733 = vadd.f32 %v626, %v732
      %v734 = vpop.f32.mrb[0].mxu0
      %v735 = vadd.f32 %v631, %v734
      %v736 = vpop.f32.mrb[0].mxu0
      %v737 = vadd.f32 %v631, %v736
      %738 = vmatprep.mubr.bf16.mxu0 0
      %739 = vmatmul.mubr.bf16.gmra.mrb[0].mxu0 %v681
      %v740 = vpop.f32.mrb[0].mxu0
      %v741 = vadd.f32 %v636, %v740
      %v742 = vpop.f32.mrb[0].mxu0
      %v743 = vadd.f32 %v636, %v742
      %v744 = vpop.f32.mrb[0].mxu0
      %v745 = vadd.f32 %v641, %v744
      %v746 = vpop.f32.mrb[0].mxu0
      %v747 = vadd.f32 %v641, %v746
      %748 = vmatprep.mubr.bf16.mxu0 0
      %749 = vmatmul.mubr.bf16.gmra.mrb[0].mxu0 %v684
      %v750 = vpop.f32.mrb[0].mxu0
      %v751 = vadd.f32 %v646, %v750
      %v752 = vpop.f32.mrb[0].mxu0
      %v753 = vadd.f32 %v646, %v752
      %v754 = vpop.f32.mrb[0].mxu0
      %v755 = vadd.f32 %v651, %v754
      %v756 = vpop.f32.mrb[0].mxu0
      %v757 = vadd.f32 %v651, %v756
      %758 = vdwg.mxu0
      %759 = vmatprep.subr.bf16.mxu0 %v592
      %760 = vmatpush1.bf16.msra.mxu0 %v591
      %761 = vmatprep.subr.bf16.mxu0 %v596
      %762 = vmatpush1.bf16.msra.mxu0 %v595
      %763 = vmatprep.subr.bf16.mxu0 %v600
      %764 = vmatpush1.bf16.msra.mxu0 %v599
      %765 = vmatprep.subr.bf16.mxu0 %v604
      %766 = vmatpush1.bf16.msra.mxu0 %v603
      %767 = vmatprep.subr.bf16.mxu0 0
      %768 = vmatpush1.bf16.msra.mxu0 0
      %769 = vmatprep.subr.bf16.mxu0 0
      %770 = vmatpush1.bf16.msra.mxu0 0
      %771 = vmatprep.subr.bf16.mxu0 0
      %772 = vmatpush1.bf16.msra.mxu0 0
      %773 = vmatprep.subr.bf16.mxu0 0
      %774 = vmatpush1.bf16.msra.mxu0 0
      %775 = vmatprep.subr.bf16.mxu0 0
      %776 = vmatpush1.bf16.msra.mxu0 0
      %777 = vmatprep.subr.bf16.mxu0 0
      %778 = vmatpush1.bf16.msra.mxu0 0
      %779 = vmatprep.subr.bf16.mxu0 0
      %780 = vmatpush1.bf16.msra.mxu0 0
      %781 = vmatprep.subr.bf16.mxu0 0
      %782 = vmatpush1.bf16.msra.mxu0 0
      %783 = vmatprep.subr.bf16.mxu0 0
      %784 = vmatpush1.bf16.msra.mxu0 0
      %785 = vmatprep.subr.bf16.mxu0 0
      %786 = vmatpush1.bf16.msra.mxu0 0
      %787 = vmatprep.subr.bf16.mxu0 0
      %788 = vmatpush1.bf16.msra.mxu0 0
      %789 = vmatprep.subr.bf16.mxu0 0
      %790 = vmatpush1.bf16.msra.mxu0 0
      %791 = vmatprep.mubr.bf16.mxu0 0
      %792 = vmatmul.mubr.bf16.gmra.mrb[0].mxu0 %v675
      %v793 = vpop.f32.mrb[0].mxu0
      %v794 = vadd.f32 %v616, %v793
      %v795 = vpop.f32.mrb[0].mxu0
      %v796 = vadd.f32 %v616, %v795
      %v797 = vpop.f32.mrb[0].mxu0
      %v798 = vadd.f32 %v621, %v797
      %v799 = vpop.f32.mrb[0].mxu0
      %v800 = vadd.f32 %v621, %v799
      %801 = vmatprep.mubr.bf16.mxu0 0
      %802 = vmatmul.mubr.bf16.gmra.mrb[0].mxu0 %v678
      %v803 = vpop.f32.mrb[0].mxu0
      %v804 = vadd.f32 %v626, %v803
      %v805 = vpop.f32.mrb[0].mxu0
      %v806 = vadd.f32 %v626, %v805
      %v807 = vpop.f32.mrb[0].mxu0
      %v808 = vadd.f32 %v631, %v807
      %v809 = vpop.f32.mrb[0].mxu0
      %v810 = vadd.f32 %v631, %v809
      %811 = vmatprep.mubr.bf16.mxu0 0
      %812 = vmatmul.mubr.bf16.gmra.mrb[0].mxu0 %v681
      %v813 = vpop.f32.mrb[0].mxu0
      %v814 = vadd.f32 %v636, %v813
      %v815 = vpop.f32.mrb[0].mxu0
      %v816 = vadd.f32 %v636, %v815
      %v817 = vpop.f32.mrb[0].mxu0
      %v818 = vadd.f32 %v641, %v817
      %v819 = vpop.f32.mrb[0].mxu0
      %v820 = vadd.f32 %v641, %v819
      %821 = vmatprep.mubr.bf16.mxu0 0
      %822 = vmatmul.mubr.bf16.gmra.mrb[0].mxu0 %v684
      %v823 = vpop.f32.mrb[0].mxu0
      %v824 = vadd.f32 %v646, %v823
      %v825 = vpop.f32.mrb[0].mxu0
      %v826 = vadd.f32 %v646, %v825
      %v827 = vpop.f32.mrb[0].mxu0
      %v828 = vadd.f32 %v651, %v827
      %v829 = vpop.f32.mrb[0].mxu0
      %v830 = vadd.f32 %v651, %v829
      %831 = vdwg.mxu0
      %v832 = vmax.f32 %v721, 0.0
      %v833 = vmax.f32 %v723, 0.0
      %v834 = vmax.f32 %v794, 0.0
      %v835 = vmax.f32 %v796, 0.0
      %v836 = vmax.f32 %v725, 0.0
      %v837 = vmax.f32 %v727, 0.0
      %v838 = vmax.f32 %v798, 0.0
      %v839 = vmax.f32 %v800, 0.0
      %v840 = vmax.f32 %v731, 0.0
      %v841 = vmax.f32 %v733, 0.0
      %v842 = vmax.f32 %v804, 0.0
      %v843 = vmax.f32 %v806, 0.0
      %v844 = vmax.f32 %v735, 0.0
      %v845 = vmax.f32 %v737, 0.0
      %v846 = vmax.f32 %v808, 0.0
      %v847 = vmax.f32 %v810, 0.0
      %v848 = vmax.f32 %v741, 0.0
      %v849 = vmax.f32 %v743, 0.0
      %v850 = vmax.f32 %v814, 0.0
      %v851 = vmax.f32 %v816, 0.0
      %v852 = vmax.f32 %v745, 0.0
      %v853 = vmax.f32 %v747, 0.0
      %v854 = vmax.f32 %v818, 0.0
      %v855 = vmax.f32 %v820, 0.0
      %v856 = vmax.f32 %v751, 0.0
      %v857 = vmax.f32 %v753, 0.0
      %v858 = vmax.f32 %v824, 0.0
      %v859 = vmax.f32 %v826, 0.0
      %v860 = vmax.f32 %v755, 0.0
      %v861 = vmax.f32 %v757, 0.0
      %v862 = vmax.f32 %v828, 0.0
      %v863 = vmax.f32 %v830, 0.0
      %v864 = vld [vmem:[%s5] sm:$0xff]
      %v865 = vld [vmem:[%s5 + $0x8] sm:$0xff]
      %v866 = vld [vmem:[%s5 + $0x10] sm:$0xff]
      %v867 = vld [vmem:[%s5 + $0x18] sm:$0xff]
      %v868 = vld [vmem:[%s5 + $0x20] sm:$0xff]
      %v869 = vld [vmem:[%s5 + $0x28] sm:$0xff]
      %v870 = vld [vmem:[%s5 + $0x30] sm:$0xff]
      %v871 = vld [vmem:[%s5 + $0x38] sm:$0xff]
      %873 = vset.pattern.permute.xlu0 0
      %874 = vperm.xlu0 %873, %v864
      %v875 = vpop.permute.xlu0 %874
      %878 = vset.pattern.permute.xlu0 0
      %879 = vperm.xlu0 %878, %v865
      %v880 = vpop.permute.xlu0 %879
      %883 = vset.pattern.permute.xlu0 0
      %884 = vperm.xlu0 %883, %v866
      %v885 = vpop.permute.xlu0 %884
      %888 = vset.pattern.permute.xlu0 0
      %889 = vperm.xlu0 %888, %v867
      %v890 = vpop.permute.xlu0 %889
      %893 = vset.pattern.permute.xlu0 0
      %894 = vperm.xlu0 %893, %v868
      %v895 = vpop.permute.xlu0 %894
      %898 = vset.pattern.permute.xlu0 0
      %899 = vperm.xlu0 %898, %v869
      %v900 = vpop.permute.xlu0 %899
      %903 = vset.pattern.permute.xlu0 0
      %904 = vperm.xlu0 %903, %v870
      %v905 = vpop.permute.xlu0 %904
      %908 = vset.pattern.permute.xlu0 0
      %909 = vperm.xlu0 %908, %v871
      %v910 = vpop.permute.xlu0 %909
      %v912 = vmul.f32 %v832, %v875
      %v913 = vmul.f32 %v833, %v875
      %v914 = vmul.f32 %v834, %v875
      %v915 = vmul.f32 %v835, %v875
      %v916 = vmul.f32 %v836, %v880
      %v917 = vmul.f32 %v837, %v880
      %v918 = vmul.f32 %v838, %v880
      %v919 = vmul.f32 %v839, %v880
      %v920 = vmul.f32 %v840, %v885
      %v921 = vmul.f32 %v841, %v885
      %v922 = vmul.f32 %v842, %v885
      %v923 = vmul.f32 %v843, %v885
      %v924 = vmul.f32 %v844, %v890
      %v925 = vmul.f32 %v845, %v890
      %v926 = vmul.f32 %v846, %v890
      %v927 = vmul.f32 %v847, %v890
      %v928 = vmul.f32 %v848, %v895
      %v929 = vmul.f32 %v849, %v895
      %v930 = vmul.f32 %v850, %v895
      %v931 = vmul.f32 %v851, %v895
      %v932 = vmul.f32 %v852, %v900
      %v933 = vmul.f32 %v853, %v900
      %v934 = vmul.f32 %v854, %v900
      %v935 = vmul.f32 %v855, %v900
      %v936 = vmul.f32 %v856, %v905
      %v937 = vmul.f32 %v857, %v905
      %v938 = vmul.f32 %v858, %v905
      %v939 = vmul.f32 %v859, %v905
      %v940 = vmul.f32 %v860, %v910
      %v941 = vmul.f32 %v861, %v910
      %v942 = vmul.f32 %v862, %v910
      %v943 = vmul.f32 %v863, %v910
      %v944 = vadd.f32 %v912, %v916
      %v945 = vadd.f32 %v944, %v920
      %v946 = vadd.f32 %v945, %v924
      %v947 = vadd.f32 %v946, %v928
      %v948 = vadd.f32 %v947, %v932
      %v949 = vadd.f32 %v948, %v936
      %v950 = vadd.f32 %v949, %v940
      %v951 = vrot.slane %v950, 4
      %v952 = vadd.f32 %v950, %v951
      %v953 = vrot.slane %v952, 2
      %v954 = vadd.f32 %v952, %v953
      %v955 = vrot.slane %v954, 1
      %v956 = vadd.f32 %v954, %v955
      %v957 = vadd.f32 %v913, %v917
      %v958 = vadd.f32 %v957, %v921
      %v959 = vadd.f32 %v958, %v925
      %v960 = vadd.f32 %v959, %v929
      %v961 = vadd.f32 %v960, %v933
      %v962 = vadd.f32 %v961, %v937
      %v963 = vadd.f32 %v962, %v941
      %v964 = vrot.slane %v963, 4
      %v965 = vadd.f32 %v963, %v964
      %v966 = vrot.slane %v965, 2
      %v967 = vadd.f32 %v965, %v966
      %v968 = vrot.slane %v967, 1
      %v969 = vadd.f32 %v967, %v968
      %v970 = vadd.f32 %v914, %v918
      %v971 = vadd.f32 %v970, %v922
      %v972 = vadd.f32 %v971, %v926
      %v973 = vadd.f32 %v972, %v930
      %v974 = vadd.f32 %v973, %v934
      %v975 = vadd.f32 %v974, %v938
      %v976 = vadd.f32 %v975, %v942
      %v977 = vrot.slane %v976, 4
      %v978 = vadd.f32 %v976, %v977
      %v979 = vrot.slane %v978, 2
      %v980 = vadd.f32 %v978, %v979
      %v981 = vrot.slane %v980, 1
      %v982 = vadd.f32 %v980, %v981
      %v983 = vadd.f32 %v915, %v919
      %v984 = vadd.f32 %v983, %v923
      %v985 = vadd.f32 %v984, %v927
      %v986 = vadd.f32 %v985, %v931
      %v987 = vadd.f32 %v986, %v935
      %v988 = vadd.f32 %v987, %v939
      %v989 = vadd.f32 %v988, %v943
      %v990 = vrot.slane %v989, 4
      %v991 = vadd.f32 %v989, %v990
      %v992 = vrot.slane %v991, 2
      %v993 = vadd.f32 %v991, %v992
      %v994 = vrot.slane %v993, 1
      %v995 = vadd.f32 %v993, %v994
      %s996 = sld [smem:[#allocation2]]
      %v997 = vstv %s996
      %v998 = vadd.f32 %v956, %v997
      %v999 = vadd.f32 %v969, %v997
      %v1000 = vadd.f32 %v982, %v997
      %v1001 = vadd.f32 %v995, %v997
      %v1006 = vcombine.low %v998, %v999
      %v1007 = vcombine.low %v1000, %v1001
      %v1009 = vunpack.c.l.s4 1966171168
      %v1010 = vunpack.c.0.s8 %v1009
      %v1011 = vlaneseq
      %v1012 = vshrl.u32 %v1011, 7
      %v1013 = vsub.s32 %v1010, %v1012
      %v1014 = vrot.slane %v1006, %v1013
      %v1016 = vunpack.c.l.s4 1966171168
      %v1017 = vunpack.c.0.s8 %v1016
      %v1018 = vlaneseq
      %v1019 = vshrl.u32 %v1018, 7
      %v1020 = vsub.s32 %v1017, %v1019
      %v1021 = vrot.slane %v1007, %v1020
      %v1022 = vcombine.low %v1014, %v1021
      %v1024 = vunpack.c.l.s4 1966171168
      %v1025 = vunpack.c.0.s8 %v1024
      %v1026 = vlaneseq
      %v1027 = vshrl.u32 %v1026, 7
      %v1028 = vsub.s32 %v1025, %v1027
      %v1029 = vrot.slane %v1022, %v1028
      %v1031 = vlaneseq
      %vm1032 = vcmp.ge.s32.totalorder %v1031, 0
      %vm1033 = vcmp.lt.s32.totalorder %v1031, 512
      %vm1034 = vmand %vm1032, %vm1033
      %1035 = vst.msk [vmem:[%s279] sm:$0xf] %vm1034, %v1029
      %s1036 = smul.u32 4, %s19
      %p1037 = scmp.lt.s32.totalorder %s1036, 7
      %s1038 = scalar_select %p1037, %s1036, 7
      %s1039 = scalar_lea.vmem %s7, %s1038
      // Predicated region
      $region49: #{dqn_forward.1} parent=47 // pred_check
        %p1040 = pneg %p189
      $region50: #{dqn_forward.1} parent=47 // pred_check_branch
        %1042 = sbr.rel (%p1040) target = $region52
      $region51: #{dqn_forward.1} parent=47 // pred_region
        %s1043 = smul.u32 4, %s19
      $region52: #{dqn_forward.1} parent=47 // pred_fallthru
        _
    $region48: #{dqn_forward.1} parent=5 // pred_fallthru
      _
    %p1044 = scmp.le.s32.totalorder 2, %s14
    // Predicated region
    $region53: #{dqn_forward.1} parent=5 // pred_check
      %p1045 = pneg %p1044
    $region54: #{dqn_forward.1} parent=5 // pred_check_branch
      %1047 = sbr.rel (%p1045) target = $region56
    $region55: #{dqn_forward.1} parent=5 // pred_region
      %s1048 = ssub.s32 %s14, 2
      // Predicated region
      $region57: #{dqn_forward.1} parent=55 // pred_check
        %p1049 = pneg %p195
      $region58: #{dqn_forward.1} parent=55 // pred_check_branch
        %1051 = sbr.rel (%p1049) target = $region60
      $region59: #{dqn_forward.1} parent=55 // pred_region
        %s1052 = smul.u32 4, %s20
        %p1053 = scmp.lt.s32.totalorder %s1052, 7
        %s1054 = scalar_select %p1053, %s1052, 7
        %s1055 = scalar_lea.vmem %s7, %s1054
      $region60: #{dqn_forward.1} parent=55 // pred_fallthru
        _
    $region56: #{dqn_forward.1} parent=5 // pred_fallthru
      _
  $region6: #{dqn_forward.1} parent=0 // loop_footer
    %s18 = sadd.s32 1, %s14
  $region7: #{dqn_forward.1} parent=0 // loop_footer_branch
    %13 = sbr.rel target = $region3
  $region8: #{dqn_forward.1} parent=0 // loop_exit
    _

</llo_original>
